<compile_context>
chip_gen: v5e
topology: v5e:2x2
jax: 0.10.0
libtpu: 0.0.40
codegen_flags: <defaults>
</compile_context>

<pallas_src>
import functools
import random

import jax
import jax.numpy as jnp
from jax.experimental import pallas as pl
from jax.experimental.pallas import tpu as pltpu


LANE = 128      # pad contracted / output feature dims to full 128-lane vregs
SUBLANE = 8     # row-tile granularity
MAX_ROW_TILE = 256


# --------------------------------------------------------------------------
# Kernel (specialized on the statically-known number of middle-layer passes)
# --------------------------------------------------------------------------
def make_dynamicnet_kernel(n_mid: int):
    def kernel(x_ref, w_in_ref, b_in_ref,
               w_mid_ref, b_mid_ref,
               w_out_ref, b_out_ref,
               y_ref):
        n_rows = x_ref.shape[0]

        # input_linear + clamp(min=0): bf16 x bf16 -> f32 accumulate on the MXU
        h = jnp.dot(x_ref[...], w_in_ref[...],
                    preferred_element_type=jnp.float32)
        h = jnp.maximum(h + b_in_ref[...], 0.0)

        # middle_linear applied n_mid times with SHARED weights (+ ReLU).
        # Statically unrolled; weight tile and broadcast bias hoisted out.
        if n_mid > 0:
            w_mid = w_mid_ref[...]                                    # load once
            b_mid = jnp.broadcast_to(b_mid_ref[...],
                                     (n_rows, w_mid.shape[1]))        # broadcast once
            for _ in range(n_mid):
                hm = jnp.dot(h.astype(w_mid.dtype), w_mid,
                             preferred_element_type=jnp.float32)
                h = jnp.maximum(hm + b_mid, 0.0)

        # output_linear (no activation); full 128-lane, unmasked store
        y = jnp.dot(h.astype(w_out_ref.dtype), w_out_ref[...],
                    preferred_element_type=jnp.float32)
        y_ref[...] = (y + b_out_ref[...]).astype(y_ref.dtype)

    return kernel


# --------------------------------------------------------------------------
# Cached builder: one compiled pallas_call per (n_mid, padded shapes)
# --------------------------------------------------------------------------
@functools.lru_cache(maxsize=32)
def _build_forward(n_mid: int, N_p: int, TN: int,
                   D_in_p: int, H: int, D_out_p: int):
    grid = (N_p // TN,)

    flops = 2 * N_p * (D_in_p * H + n_mid * H * H + H * D_out_p)
    bytes_accessed = (
        N_p * D_in_p * 2          # x            (bf16)
        + D_in_p * H * 2          # w_in         (bf16)
        + H * H * 2               # w_mid        (bf16)
        + H * D_out_p * 2         # w_out        (bf16)
        + 2 * H * 4               # b_in, b_mid  (f32)
        + D_out_p * 4             # b_out        (f32)
        + N_p * D_out_p * 4       # y            (f32)
    )

    call = pl.pallas_call(
        make_dynamicnet_kernel(n_mid),
        out_shape=jax.ShapeDtypeStruct((N_p, D_out_p), jnp.float32),
        grid=grid,
        in_specs=[
            pl.BlockSpec((TN, D_in_p), lambda i: (i, 0)),     # x       (row-tiled)
            pl.BlockSpec((D_in_p, H), lambda i: (0, 0)),      # w_in    (resident)
            pl.BlockSpec((1, H), lambda i: (0, 0)),           # b_in
            pl.BlockSpec((H, H), lambda i: (0, 0)),           # w_mid   (shared)
            pl.BlockSpec((1, H), lambda i: (0, 0)),           # b_mid
            pl.BlockSpec((H, D_out_p), lambda i: (0, 0)),     # w_out
            pl.BlockSpec((1, D_out_p), lambda i: (0, 0)),     # b_out
        ],
        out_specs=pl.BlockSpec((TN, D_out_p), lambda i: (i, 0)),
        compiler_params=pltpu.CompilerParams(
            dimension_semantics=("parallel",)),
        cost_estimate=pl.CostEstimate(flops=flops, transcendentals=0,
                                      bytes_accessed=bytes_accessed),
    )
    return jax.jit(call)


def _round_up(n, m):
    return ((n + m - 1) // m) * m


def _pad_last(a, target):
    pad = target - a.shape[-1]
    if pad == 0:
        return a
    cfg = [(0, 0)] * (a.ndim - 1) + [(0, pad)]
    return jnp.pad(a, cfg)


def dynamic_net_forward(x, params, n_mid):
    """DynamicNet forward in one Pallas kernel.

    x:      (N, D_in) float32
    params: w_in (D_in,H), b_in (1,H), w_mid (H,H), b_mid (1,H),
            w_out (H,D_out), b_out (1,D_out)  -- weights stored (in, out),
            i.e. the transpose of torch.nn.Linear.weight.
    n_mid:  Python int in [0, 3] -> number of middle-layer applications.
    """
    N, D_in = x.shape
    H = params["w_in"].shape[1]
    D_out = params["w_out"].shape[1]

    D_in_p = _round_up(D_in, LANE)
    D_out_p = _round_up(D_out, LANE)

    # Row tiling: pad N to a sublane multiple, tile at most MAX_ROW_TILE rows.
    N_8 = _round_up(max(N, SUBLANE), SUBLANE)
    TN = min(N_8, MAX_ROW_TILE)
    N_p = _round_up(N_8, TN)

    bf16 = jnp.bfloat16
    # Zero-pad contracted dim (x cols / w_in rows), output dim (w_out / b_out
    # cols) and batch rows; zeros are exact no-ops in the f32 accumulate and
    # padded rows are sliced off below.
    x_p = jnp.pad(x, ((0, N_p - N), (0, D_in_p - D_in))).astype(bf16)
    w_in_p = jnp.pad(params["w_in"],
                     ((0, D_in_p - D_in), (0, 0))).astype(bf16)
    w_mid = params["w_mid"].astype(bf16)
    w_out_p = _pad_last(params["w_out"], D_out_p).astype(bf16)
    b_out_p = _pad_last(params["b_out"], D_out_p)           # f32
    b_in = params["b_in"]                                   # f32
    b_mid = params["b_mid"]                                 # f32

    fwd = _build_forward(int(n_mid), N_p, TN, D_in_p, H, D_out_p)
    y_padded = fwd(x_p, w_in_p, b_in, w_mid, b_mid, w_out_p, b_out_p)
    return y_padded[:N, :D_out]


# --------------------------------------------------------------------------
# Parameter init (mimics nn.Linear's uniform init scheme), f32 master copies
# --------------------------------------------------------------------------
def init_params(key, D_in, H, D_out):
    ks = jax.random.split(key, 6)

    def linear(kw, kb, fan_in, fan_out):
        bound = 1.0 / jnp.sqrt(jnp.float32(fan_in))
        w = jax.random.uniform(kw, (fan_in, fan_out), jnp.float32, -bound, bound)
        b = jax.random.uniform(kb, (1, fan_out), jnp.float32, -bound, bound)
        return w, b

    w_in, b_in = linear(ks[0], ks[1], D_in, H)
    w_mid, b_mid = linear(ks[2], ks[3], H, H)
    w_out, b_out = linear(ks[4], ks[5], H, D_out)
    return dict(w_in=w_in, b_in=b_in, w_mid=w_mid, b_mid=b_mid,
                w_out=w_out, b_out=b_out)


if __name__ == "__main__":
    # Small shapes consistent with the module: N x D_in -> H -> ... -> D_out
    N, D_in, H, D_out = 8, 64, 128, 16

    key = jax.random.PRNGKey(0)
    kx, kp = jax.random.split(key)
    x = jax.random.normal(kx, (N, D_in), dtype=jnp.float32)
    params = init_params(kp, D_in, H, D_out)

    # DynamicNet picks random.randint(0, 3) middle passes per forward call;
    # seed Python's RNG so the script is deterministic.
    random.seed(0)
    n_mid = random.randint(0, 3)

    y = dynamic_net_forward(x, params, n_mid)
    y = jax.block_until_ready(y)
    assert y.shape == (N, D_out)

    # Reference 1: same numerics as the kernel (bf16 operands, f32 accumulate).
    def lin_bf16(h, w, b):
        return jnp.dot(h.astype(jnp.bfloat16), w.astype(jnp.bfloat16),
                       preferred_element_type=jnp.float32) + b

    h = jnp.maximum(lin_bf16(x, params["w_in"], params["b_in"]), 0.0)
    for _ in range(n_mid):
        h = jnp.maximum(lin_bf16(h, params["w_mid"], params["b_mid"]), 0.0)
    y_ref_bf16 = lin_bf16(h, params["w_out"], params["b_out"])
    assert jnp.allclose(y, y_ref_bf16, atol=1e-2, rtol=1e-2)

    # Reference 2: original full-f32 module semantics (loose tol for bf16 cast).
    hf = jnp.maximum(x @ params["w_in"] + params["b_in"], 0.0)
    for _ in range(n_mid):
        hf = jnp.maximum(hf @ params["w_mid"] + params["b_mid"], 0.0)
    y_ref_f32 = hf @ params["w_out"] + params["b_out"]
    assert jnp.allclose(y, y_ref_f32, atol=1e-1, rtol=1e-1)

    # Exercise every specialized variant once (weight sharing in all of them).
    for k in range(4):
        jax.block_until_ready(dynamic_net_forward(x, params, k))

    print("KERNEL_OK")
</pallas_src>

<mosaic_0001>
module attributes {stable_mosaic.version = 11 : i64} {
  func.func @kernel(%arg0: i32, %arg1: memref<8x128xbf16, #tpu.memory_space<vmem>>, %arg2: memref<128x128xbf16, #tpu.memory_space<vmem>>, %arg3: memref<1x128xf32, #tpu.memory_space<vmem>>, %arg4: memref<128x128xbf16, #tpu.memory_space<vmem>>, %arg5: memref<1x128xf32, #tpu.memory_space<vmem>>, %arg6: memref<128x128xbf16, #tpu.memory_space<vmem>>, %arg7: memref<1x128xf32, #tpu.memory_space<vmem>>, %arg8: memref<8x128xf32, #tpu.memory_space<vmem>>) attributes {dimension_semantics = [#tpu.dimension_semantics<parallel>], iteration_bounds = array<i64: 1>, scalar_prefetch = 0 : i64, scratch_operands = 0 : i64, tpu.core_type = #tpu.core_type<tc>, window_params = [{transform_indices = @transform_0, window_bounds = array<i64: 8, 128>}, {pipeline_mode = #tpu.pipeline_mode<synchronous>, transform_indices = @transform_1, window_bounds = array<i64: 128, 128>}, {pipeline_mode = #tpu.pipeline_mode<synchronous>, transform_indices = @transform_2, window_bounds = array<i64: 1, 128>}, {pipeline_mode = #tpu.pipeline_mode<synchronous>, transform_indices = @transform_3, window_bounds = array<i64: 128, 128>}, {pipeline_mode = #tpu.pipeline_mode<synchronous>, transform_indices = @transform_4, window_bounds = array<i64: 1, 128>}, {pipeline_mode = #tpu.pipeline_mode<synchronous>, transform_indices = @transform_5, window_bounds = array<i64: 128, 128>}, {pipeline_mode = #tpu.pipeline_mode<synchronous>, transform_indices = @transform_6, window_bounds = array<i64: 1, 128>}, {transform_indices = @transform_7, window_bounds = array<i64: 8, 128>}]} {
    %c0 = arith.constant 0 : index
    %c0_0 = arith.constant 0 : index
    %0 = vector.load %arg1[%c0, %c0_0] : memref<8x128xbf16, #tpu.memory_space<vmem>>, vector<8x128xbf16>
    %c0_1 = arith.constant 0 : index
    %c0_2 = arith.constant 0 : index
    %1 = vector.load %arg2[%c0_1, %c0_2] : memref<128x128xbf16, #tpu.memory_space<vmem>>, vector<128x128xbf16>
    %cst = arith.constant dense<0.000000e+00> : vector<8x128xf32>
    %2 = tpu.matmul %0, %1, %cst {dimension_numbers = #tpu.dot_dimension_numbers<[1], [0], [0], [1], [0, 0, 1, 1], [], []>} : vector<8x128xbf16>, vector<128x128xbf16>, vector<8x128xf32> -> vector<8x128xf32>
    %c0_3 = arith.constant 0 : index
    %c0_4 = arith.constant 0 : index
    %3 = vector.load %arg3[%c0_3, %c0_4] : memref<1x128xf32, #tpu.memory_space<vmem>>, vector<1x128xf32>
    %4 = vector.broadcast %3 : vector<1x128xf32> to vector<8x128xf32>
    %5 = arith.addf %2, %4 : vector<8x128xf32>
    %cst_5 = arith.constant 0.000000e+00 : f32
    %6 = vector.broadcast %cst_5 : f32 to vector<8x128xf32>
    %7 = arith.maximumf %5, %6 : vector<8x128xf32>
    %c0_6 = arith.constant 0 : index
    %c0_7 = arith.constant 0 : index
    %8 = vector.load %arg4[%c0_6, %c0_7] : memref<128x128xbf16, #tpu.memory_space<vmem>>, vector<128x128xbf16>
    %c0_8 = arith.constant 0 : index
    %c0_9 = arith.constant 0 : index
    %9 = vector.load %arg5[%c0_8, %c0_9] : memref<1x128xf32, #tpu.memory_space<vmem>>, vector<1x128xf32>
    %10 = vector.shape_cast %9 : vector<1x128xf32> to vector<1x128xf32>
    %11 = vector.broadcast %10 : vector<1x128xf32> to vector<8x128xf32>
    %12 = arith.truncf %7 : vector<8x128xf32> to vector<8x128xbf16>
    %cst_10 = arith.constant dense<0.000000e+00> : vector<8x128xf32>
    %13 = tpu.matmul %12, %8, %cst_10 {dimension_numbers = #tpu.dot_dimension_numbers<[1], [0], [0], [1], [0, 0, 1, 1], [], []>} : vector<8x128xbf16>, vector<128x128xbf16>, vector<8x128xf32> -> vector<8x128xf32>
    %14 = arith.addf %13, %11 : vector<8x128xf32>
    %cst_11 = arith.constant 0.000000e+00 : f32
    %15 = vector.broadcast %cst_11 : f32 to vector<8x128xf32>
    %16 = arith.maximumf %14, %15 : vector<8x128xf32>
    %17 = arith.truncf %16 : vector<8x128xf32> to vector<8x128xbf16>
    %cst_12 = arith.constant dense<0.000000e+00> : vector<8x128xf32>
    %18 = tpu.matmul %17, %8, %cst_12 {dimension_numbers = #tpu.dot_dimension_numbers<[1], [0], [0], [1], [0, 0, 1, 1], [], []>} : vector<8x128xbf16>, vector<128x128xbf16>, vector<8x128xf32> -> vector<8x128xf32>
    %19 = arith.addf %18, %11 : vector<8x128xf32>
    %cst_13 = arith.constant 0.000000e+00 : f32
    %20 = vector.broadcast %cst_13 : f32 to vector<8x128xf32>
    %21 = arith.maximumf %19, %20 : vector<8x128xf32>
    %22 = arith.truncf %21 : vector<8x128xf32> to vector<8x128xbf16>
    %cst_14 = arith.constant dense<0.000000e+00> : vector<8x128xf32>
    %23 = tpu.matmul %22, %8, %cst_14 {dimension_numbers = #tpu.dot_dimension_numbers<[1], [0], [0], [1], [0, 0, 1, 1], [], []>} : vector<8x128xbf16>, vector<128x128xbf16>, vector<8x128xf32> -> vector<8x128xf32>
    %24 = arith.addf %23, %11 : vector<8x128xf32>
    %cst_15 = arith.constant 0.000000e+00 : f32
    %25 = vector.broadcast %cst_15 : f32 to vector<8x128xf32>
    %26 = arith.maximumf %24, %25 : vector<8x128xf32>
    %27 = arith.truncf %26 : vector<8x128xf32> to vector<8x128xbf16>
    %c0_16 = arith.constant 0 : index
    %c0_17 = arith.constant 0 : index
    %28 = vector.load %arg6[%c0_16, %c0_17] : memref<128x128xbf16, #tpu.memory_space<vmem>>, vector<128x128xbf16>
    %cst_18 = arith.constant dense<0.000000e+00> : vector<8x128xf32>
    %29 = tpu.matmul %27, %28, %cst_18 {dimension_numbers = #tpu.dot_dimension_numbers<[1], [0], [0], [1], [0, 0, 1, 1], [], []>} : vector<8x128xbf16>, vector<128x128xbf16>, vector<8x128xf32> -> vector<8x128xf32>
    %c0_19 = arith.constant 0 : index
    %c0_20 = arith.constant 0 : index
    %30 = vector.load %arg7[%c0_19, %c0_20] : memref<1x128xf32, #tpu.memory_space<vmem>>, vector<1x128xf32>
    %31 = vector.broadcast %30 : vector<1x128xf32> to vector<8x128xf32>
    %32 = arith.addf %29, %31 : vector<8x128xf32>
    %c0_21 = arith.constant 0 : index
    %c0_22 = arith.constant 0 : index
    %33 = vector.load %arg8[%c0_21, %c0_22] : memref<8x128xf32, #tpu.memory_space<vmem>>, vector<8x128xf32>
    tpu.vector_store %arg8[%c0_21, %c0_22], %32 {strides = array<i32>} : memref<8x128xf32, #tpu.memory_space<vmem>>, vector<8x128xf32>,
    return
  }
  func.func @transform_0(%arg0: i32) -> (i32, i32) {
    %c0_i32 = arith.constant 0 : i32
    %c0_i32_0 = arith.constant 0 : i32
    return %arg0, %c0_i32 : i32, i32
  }
  func.func @transform_1(%arg0: i32) -> (i32, i32) {
    %c0_i32 = arith.constant 0 : i32
    %c0_i32_0 = arith.constant 0 : i32
    %c0_i32_1 = arith.constant 0 : i32
    return %c0_i32, %c0_i32_0 : i32, i32
  }
  func.func @transform_2(%arg0: i32) -> (i32, i32) {
    %c0_i32 = arith.constant 0 : i32
    %c0_i32_0 = arith.constant 0 : i32
    %c0_i32_1 = arith.constant 0 : i32
    return %c0_i32, %c0_i32_0 : i32, i32
  }
  func.func @transform_3(%arg0: i32) -> (i32, i32) {
    %c0_i32 = arith.constant 0 : i32
    %c0_i32_0 = arith.constant 0 : i32
    %c0_i32_1 = arith.constant 0 : i32
    return %c0_i32, %c0_i32_0 : i32, i32
  }
  func.func @transform_4(%arg0: i32) -> (i32, i32) {
    %c0_i32 = arith.constant 0 : i32
    %c0_i32_0 = arith.constant 0 : i32
    %c0_i32_1 = arith.constant 0 : i32
    return %c0_i32, %c0_i32_0 : i32, i32
  }
  func.func @transform_5(%arg0: i32) -> (i32, i32) {
    %c0_i32 = arith.constant 0 : i32
    %c0_i32_0 = arith.constant 0 : i32
    %c0_i32_1 = arith.constant 0 : i32
    return %c0_i32, %c0_i32_0 : i32, i32
  }
  func.func @transform_6(%arg0: i32) -> (i32, i32) {
    %c0_i32 = arith.constant 0 : i32
    %c0_i32_0 = arith.constant 0 : i32
    %c0_i32_1 = arith.constant 0 : i32
    return %c0_i32, %c0_i32_0 : i32, i32
  }
  func.func @transform_7(%arg0: i32) -> (i32, i32) {
    %c0_i32 = arith.constant 0 : i32
    %c0_i32_0 = arith.constant 0 : i32
    return %arg0, %c0_i32 : i32, i32
  }
}

</mosaic_0001>

<llo_original>
// kernel: tpu_custom_call.1
$region0: #{tpu_custom_call.1}
  #allocation0 [shape = 'u32[]', space=smem, size = 0x4, offset = 0x4, fixed_abs, tag = 'smem constant byte address 0x4 - core index']
  #allocation1 [shape = 'u32[72,128]{1,0:T(1,128)}', space=vmem, size = 0x9000, scoped, tag = 'internal scratch']
  %s0 = inlined_call_operand.hbm [shape: bf16[8,128], index: 0, kind: input, shape index: {}]
  %s1 = inlined_call_operand.hbm [shape: bf16[128,128], index: 1, kind: input, shape index: {}]
  %s2 = inlined_call_operand.vmem [shape: f32[1,128], index: 2, kind: input, shape index: {}]
  %s3 = inlined_call_operand.hbm [shape: bf16[128,128], index: 3, kind: input, shape index: {}]
  %s4 = inlined_call_operand.vmem [shape: f32[1,128], index: 4, kind: input, shape index: {}]
  %s5 = inlined_call_operand.hbm [shape: bf16[128,128], index: 5, kind: input, shape index: {}]
  %s6 = inlined_call_operand.vmem [shape: f32[1,128], index: 6, kind: input, shape index: {}]
  %s7 = inlined_call_operand.hbm [shape: f32[8,128], index: 7, kind: output, shape index: {}]
  %s8 = sld [smem:[#allocation0]]
  $region54: #{tpu_custom_call.1} parent=0
    _
  %s10 = ssub.s32 1, %s8
  %s11 = scalar_select 0, %s10, %s8
  $region1: #{tpu_custom_call.1} parent=0
    #allocation2 [shape = 'u8[2048]{0}', space=vmem, size = 0x800, scoped, tag = 'input window, operand 0, single buffered']
    #allocation3 [shape = 's32[1]{0}', space=sflag, size = 0x4, scoped, tag = 'scoped memory for tpu_custom_call.1']
    #allocation4 [shape = 's32[1]{0}', space=sflag, size = 0x4, scoped, tag = 'scoped memory for tpu_custom_call.1']
    #allocation5 [shape = 'u8[32768]{0}', space=vmem, size = 0x8000, scoped, tag = 'input window, operand 1, single buffered']
    #allocation6 [shape = 's32[1]{0}', space=sflag, size = 0x4, scoped, tag = 'scoped memory for tpu_custom_call.1']
    #allocation7 [shape = 'u8[32768]{0}', space=vmem, size = 0x8000, scoped, tag = 'input window, operand 3, single buffered']
    #allocation8 [shape = 'u8[32768]{0}', space=vmem, size = 0x8000, scoped, tag = 'input window, operand 5, single buffered']
    #allocation9 [shape = 's32[1]{0}', space=sflag, size = 0x4, scoped, tag = 'scoped memory for tpu_custom_call.1']
    #allocation10 [shape = 'u8[4096]{0}', space=vmem, size = 0x1000, scoped, tag = 'output window, operand 0, single buffered']
    %12 = vsyncpa [#allocation3], 0
    %13 = vsyncpa [#allocation6], 0
    %14 = vsyncpa [#allocation9], 0
    %15 = vsyncpa [#allocation4], 0
    // Predicated region
    $region2: #{tpu_custom_call.1} parent=1 // pred_check
      _
    $region3: #{tpu_custom_call.1} parent=1 // pred_check_branch
      %17 = sbr.rel (0) target = $region5
    $region4: #{tpu_custom_call.1} parent=1 // pred_region
      %19 = vsyncadd [#allocation3], 0
      %s21 = sshll.u32 %s0, 4
      %s22 = int_to_ptr.hbm [resolvable:$true] %s21
      %s23 = sshll.u32 [#allocation2], 4
      %s24 = int_to_ptr.vmem [resolvable:$true] %s23
      %26 = dma.hbm_to_vmem [thread:$0]  %s22, 64, %s24, [#allocation3]
    $region5: #{tpu_custom_call.1} parent=1 // pred_fallthru
      _
    // Predicated region
    $region6: #{tpu_custom_call.1} parent=1 // pred_check
      _
    $region7: #{tpu_custom_call.1} parent=1 // pred_check_branch
      %28 = sbr.rel (0) target = $region9
    $region8: #{tpu_custom_call.1} parent=1 // pred_region
      %30 = vsyncadd [#allocation6], 0
      %s31 = sshll.u32 %s1, 4
      %s32 = int_to_ptr.hbm [resolvable:$true] %s31
      %s33 = sshll.u32 [#allocation5], 4
      %s34 = int_to_ptr.vmem [resolvable:$true] %s33
      %39 = dma.hbm_to_vmem [thread:$0]  %s32, 1024, %s34, [#allocation6], 64, 64, 4
    $region9: #{tpu_custom_call.1} parent=1 // pred_fallthru
      _
    // Predicated region
    $region10: #{tpu_custom_call.1} parent=1 // pred_check
      _
    $region11: #{tpu_custom_call.1} parent=1 // pred_check_branch
      %41 = sbr.rel (0) target = $region13
    $region12: #{tpu_custom_call.1} parent=1 // pred_region
      _
    $region13: #{tpu_custom_call.1} parent=1 // pred_fallthru
      _
    // Predicated region
    $region14: #{tpu_custom_call.1} parent=1 // pred_check
      _
    $region15: #{tpu_custom_call.1} parent=1 // pred_check_branch
      %43 = sbr.rel (0) target = $region17
    $region16: #{tpu_custom_call.1} parent=1 // pred_region
      %45 = vsyncadd [#allocation6], 0
      %s46 = sshll.u32 %s3, 4
      %s47 = int_to_ptr.hbm [resolvable:$true] %s46
      %s48 = sshll.u32 [#allocation7], 4
      %s49 = int_to_ptr.vmem [resolvable:$true] %s48
      %54 = dma.hbm_to_vmem [thread:$0]  %s47, 1024, %s49, [#allocation6], 64, 64, 4
    $region17: #{tpu_custom_call.1} parent=1 // pred_fallthru
      _
    // Predicated region
    $region18: #{tpu_custom_call.1} parent=1 // pred_check
      _
    $region19: #{tpu_custom_call.1} parent=1 // pred_check_branch
      %56 = sbr.rel (0) target = $region21
    $region20: #{tpu_custom_call.1} parent=1 // pred_region
      _
    $region21: #{tpu_custom_call.1} parent=1 // pred_fallthru
      _
    // Predicated region
    $region22: #{tpu_custom_call.1} parent=1 // pred_check
      _
    $region23: #{tpu_custom_call.1} parent=1 // pred_check_branch
      %58 = sbr.rel (0) target = $region25
    $region24: #{tpu_custom_call.1} parent=1 // pred_region
      %60 = vsyncadd [#allocation9], 0
      %s61 = sshll.u32 %s5, 4
      %s62 = int_to_ptr.hbm [resolvable:$true] %s61
      %s63 = sshll.u32 [#allocation8], 4
      %s64 = int_to_ptr.vmem [resolvable:$true] %s63
      %69 = dma.hbm_to_vmem [thread:$0]  %s62, 1024, %s64, [#allocation9], 64, 64, 4
    $region25: #{tpu_custom_call.1} parent=1 // pred_fallthru
      _
    // Predicated region
    $region26: #{tpu_custom_call.1} parent=1 // pred_check
      _
    $region27: #{tpu_custom_call.1} parent=1 // pred_check_branch
      %71 = sbr.rel (0) target = $region29
    $region28: #{tpu_custom_call.1} parent=1 // pred_region
      _
    $region29: #{tpu_custom_call.1} parent=1 // pred_fallthru
      _
    // Predicated region
    $region30: #{tpu_custom_call.1} parent=1 // pred_check
      _
    $region31: #{tpu_custom_call.1} parent=1 // pred_check_branch
      %73 = sbr.rel (0) target = $region33
    $region32: #{tpu_custom_call.1} parent=1 // pred_region
      %75 = dma.done [#allocation3], 64
    $region33: #{tpu_custom_call.1} parent=1 // pred_fallthru
      _
    // Predicated region
    $region34: #{tpu_custom_call.1} parent=1 // pred_check
      _
    $region35: #{tpu_custom_call.1} parent=1 // pred_check_branch
      %77 = sbr.rel (0) target = $region37
    $region36: #{tpu_custom_call.1} parent=1 // pred_region
      %79 = dma.done [#allocation6], 1024
    $region37: #{tpu_custom_call.1} parent=1 // pred_fallthru
      _
    // Predicated region
    $region38: #{tpu_custom_call.1} parent=1 // pred_check
      _
    $region39: #{tpu_custom_call.1} parent=1 // pred_check_branch
      %81 = sbr.rel (0) target = $region41
    $region40: #{tpu_custom_call.1} parent=1 // pred_region
      %83 = dma.done [#allocation6], 1024
    $region41: #{tpu_custom_call.1} parent=1 // pred_fallthru
      _
    // Predicated region
    $region42: #{tpu_custom_call.1} parent=1 // pred_check
      _
    $region43: #{tpu_custom_call.1} parent=1 // pred_check_branch
      %85 = sbr.rel (0) target = $region45
    $region44: #{tpu_custom_call.1} parent=1 // pred_region
      %87 = dma.done [#allocation9], 1024
    $region45: #{tpu_custom_call.1} parent=1 // pred_fallthru
      _
    %v88 = vld [vmem:[#allocation2] sm:$0xf]
    %v89 = vld [vmem:[#allocation5] sm:$0xf]
    %v90 = vld [vmem:[#allocation5 + $0x4] sm:$0xf]
    %v91 = vld [vmem:[#allocation5 + $0x8] sm:$0xf]
    %v92 = vld [vmem:[#allocation5 + $0xc] sm:$0xf]
    %v93 = vld [vmem:[#allocation5 + $0x10] sm:$0xf]
    %v94 = vld [vmem:[#allocation5 + $0x14] sm:$0xf]
    %v95 = vld [vmem:[#allocation5 + $0x18] sm:$0xf]
    %v96 = vld [vmem:[#allocation5 + $0x1c] sm:$0xf]
    %v97 = vld [vmem:[#allocation5 + $0x20] sm:$0xf]
    %v98 = vld [vmem:[#allocation5 + $0x24] sm:$0xf]
    %v99 = vld [vmem:[#allocation5 + $0x28] sm:$0xf]
    %v100 = vld [vmem:[#allocation5 + $0x2c] sm:$0xf]
    %v101 = vld [vmem:[#allocation5 + $0x30] sm:$0xf]
    %v102 = vld [vmem:[#allocation5 + $0x34] sm:$0xf]
    %v103 = vld [vmem:[#allocation5 + $0x38] sm:$0xf]
    %v104 = vld [vmem:[#allocation5 + $0x3c] sm:$0xf]
    %v105 = vld [vmem:[%s2] sm:$0x1]
    %v107 = vperm.slane %v105, 0
    %v125 = vunpack.c.l.b16 %v89
    %v126 = vunpack.c.l.b16 %v90
    %v127 = vunpack.c.l.b16 %v91
    %v128 = vunpack.c.l.b16 %v92
    %v129 = vunpack.c.l.b16 %v93
    %v130 = vunpack.c.l.b16 %v94
    %v131 = vunpack.c.l.b16 %v95
    %v132 = vunpack.c.l.b16 %v96
    %v133 = vunpack.c.l.b16 %v97
    %v134 = vunpack.c.l.b16 %v98
    %v135 = vunpack.c.l.b16 %v99
    %v136 = vunpack.c.l.b16 %v100
    %v137 = vunpack.c.l.b16 %v101
    %v138 = vunpack.c.l.b16 %v102
    %v139 = vunpack.c.l.b16 %v103
    %v140 = vunpack.c.l.b16 %v104
    %v141 = vpack.c.b16 %v126, %v125
    %v142 = vpack.c.b16 %v128, %v127
    %v143 = vpack.c.b16 %v130, %v129
    %v144 = vpack.c.b16 %v132, %v131
    %v145 = vpack.c.b16 %v134, %v133
    %v146 = vpack.c.b16 %v136, %v135
    %v147 = vpack.c.b16 %v138, %v137
    %v148 = vpack.c.b16 %v140, %v139
    %157 = vmatpush.bf16.msra.mxu0 %v148
    %158 = vmatpush.bf16.msra.mxu0 %v147
    %159 = vmatpush.bf16.msra.mxu0 %v146
    %160 = vmatpush.bf16.msra.mxu0 %v145
    %161 = vmatpush.bf16.msra.mxu0 %v144
    %162 = vmatpush.bf16.msra.mxu0 %v143
    %163 = vmatpush.bf16.msra.mxu0 %v142
    %164 = vmatpush.bf16.msra.mxu0 %v141
    %165 = vmatmul.bf16.gmra.mxu0 %v88
    %v166 = vpop.f32.mrf.mxu0
    %v167 = vadd.f32 %v107, %v166
    %v168 = vpop.f32.mrf.mxu0
    %169 = vdwg.mxu0
    %v170 = vmax.f32 %v167, 0.0
    %v171 = vld [vmem:[#allocation7] sm:$0xf]
    %v172 = vld [vmem:[#allocation7 + $0x4] sm:$0xf]
    %v173 = vld [vmem:[#allocation7 + $0x8] sm:$0xf]
    %v174 = vld [vmem:[#allocation7 + $0xc] sm:$0xf]
    %v175 = vld [vmem:[#allocation7 + $0x10] sm:$0xf]
    %v176 = vld [vmem:[#allocation7 + $0x14] sm:$0xf]
    %v177 = vld [vmem:[#allocation7 + $0x18] sm:$0xf]
    %v178 = vld [vmem:[#allocation7 + $0x1c] sm:$0xf]
    %v179 = vld [vmem:[#allocation7 + $0x20] sm:$0xf]
    %v180 = vld [vmem:[#allocation7 + $0x24] sm:$0xf]
    %v181 = vld [vmem:[#allocation7 + $0x28] sm:$0xf]
    %v182 = vld [vmem:[#allocation7 + $0x2c] sm:$0xf]
    %v183 = vld [vmem:[#allocation7 + $0x30] sm:$0xf]
    %v184 = vld [vmem:[#allocation7 + $0x34] sm:$0xf]
    %v185 = vld [vmem:[#allocation7 + $0x38] sm:$0xf]
    %v186 = vld [vmem:[#allocation7 + $0x3c] sm:$0xf]
    %v187 = vld [vmem:[%s4] sm:$0x1]
    %v189 = vperm.slane %v187, 0
    %v191 = vpack.c.bf16 %v170, %v170
    %v208 = vunpack.c.l.b16 %v171
    %v209 = vunpack.c.l.b16 %v172
    %v210 = vunpack.c.l.b16 %v173
    %v211 = vunpack.c.l.b16 %v174
    %v212 = vunpack.c.l.b16 %v175
    %v213 = vunpack.c.l.b16 %v176
    %v214 = vunpack.c.l.b16 %v177
    %v215 = vunpack.c.l.b16 %v178
    %v216 = vunpack.c.l.b16 %v179
    %v217 = vunpack.c.l.b16 %v180
    %v218 = vunpack.c.l.b16 %v181
    %v219 = vunpack.c.l.b16 %v182
    %v220 = vunpack.c.l.b16 %v183
    %v221 = vunpack.c.l.b16 %v184
    %v222 = vunpack.c.l.b16 %v185
    %v223 = vunpack.c.l.b16 %v186
    %v224 = vpack.c.b16 %v209, %v208
    %v225 = vpack.c.b16 %v211, %v210
    %v226 = vpack.c.b16 %v213, %v212
    %v227 = vpack.c.b16 %v215, %v214
    %v228 = vpack.c.b16 %v217, %v216
    %v229 = vpack.c.b16 %v219, %v218
    %v230 = vpack.c.b16 %v221, %v220
    %v231 = vpack.c.b16 %v223, %v222
    %240 = vmatpush.bf16.msra.mxu0 %v231
    %241 = vmatpush.bf16.msra.mxu0 %v230
    %242 = vmatpush.bf16.msra.mxu0 %v229
    %243 = vmatpush.bf16.msra.mxu0 %v228
    %244 = vmatpush.bf16.msra.mxu0 %v227
    %245 = vmatpush.bf16.msra.mxu0 %v226
    %246 = vmatpush.bf16.msra.mxu0 %v225
    %247 = vmatpush.bf16.msra.mxu0 %v224
    %248 = vmatmul.bf16.gmra.mxu0 %v191
    %v249 = vpop.f32.mrf.mxu0
    %v250 = vadd.f32 %v189, %v249
    %v251 = vpop.f32.mrf.mxu0
    %252 = vdwg.mxu0
    %v253 = vmax.f32 %v250, 0.0
    %v254 = vpack.c.bf16 %v253, %v253
    %255 = vmatpush.bf16.msra.mxu0 %v231
    %256 = vmatpush.bf16.msra.mxu0 %v230
    %257 = vmatpush.bf16.msra.mxu0 %v229
    %258 = vmatpush.bf16.msra.mxu0 %v228
    %259 = vmatpush.bf16.msra.mxu0 %v227
    %260 = vmatpush.bf16.msra.mxu0 %v226
    %261 = vmatpush.bf16.msra.mxu0 %v225
    %262 = vmatpush.bf16.msra.mxu0 %v224
    %263 = vmatmul.bf16.gmra.mxu0 %v254
    %v264 = vpop.f32.mrf.mxu0
    %v265 = vadd.f32 %v189, %v264
    %v266 = vpop.f32.mrf.mxu0
    %267 = vdwg.mxu0
    %v268 = vmax.f32 %v265, 0.0
    %v269 = vpack.c.bf16 %v268, %v268
    %270 = vmatpush.bf16.msra.mxu0 %v231
    %271 = vmatpush.bf16.msra.mxu0 %v230
    %272 = vmatpush.bf16.msra.mxu0 %v229
    %273 = vmatpush.bf16.msra.mxu0 %v228
    %274 = vmatpush.bf16.msra.mxu0 %v227
    %275 = vmatpush.bf16.msra.mxu0 %v226
    %276 = vmatpush.bf16.msra.mxu0 %v225
    %277 = vmatpush.bf16.msra.mxu0 %v224
    %278 = vmatmul.bf16.gmra.mxu0 %v269
    %v279 = vpop.f32.mrf.mxu0
    %v280 = vadd.f32 %v189, %v279
    %v281 = vpop.f32.mrf.mxu0
    %282 = vdwg.mxu0
    %v283 = vmax.f32 %v280, 0.0
    %v284 = vpack.c.bf16 %v283, %v283
    %v285 = vld [vmem:[#allocation8] sm:$0xf]
    %v286 = vld [vmem:[#allocation8 + $0x4] sm:$0xf]
    %v287 = vld [vmem:[#allocation8 + $0x8] sm:$0xf]
    %v288 = vld [vmem:[#allocation8 + $0xc] sm:$0xf]
    %v289 = vld [vmem:[#allocation8 + $0x10] sm:$0xf]
    %v290 = vld [vmem:[#allocation8 + $0x14] sm:$0xf]
    %v291 = vld [vmem:[#allocation8 + $0x18] sm:$0xf]
    %v292 = vld [vmem:[#allocation8 + $0x1c] sm:$0xf]
    %v293 = vld [vmem:[#allocation8 + $0x20] sm:$0xf]
    %v294 = vld [vmem:[#allocation8 + $0x24] sm:$0xf]
    %v295 = vld [vmem:[#allocation8 + $0x28] sm:$0xf]
    %v296 = vld [vmem:[#allocation8 + $0x2c] sm:$0xf]
    %v297 = vld [vmem:[#allocation8 + $0x30] sm:$0xf]
    %v298 = vld [vmem:[#allocation8 + $0x34] sm:$0xf]
    %v299 = vld [vmem:[#allocation8 + $0x38] sm:$0xf]
    %v300 = vld [vmem:[#allocation8 + $0x3c] sm:$0xf]
    %v301 = vld [vmem:[%s6] sm:$0x1]
    %v303 = vperm.slane %v301, 0
    %v321 = vunpack.c.l.b16 %v285
    %v322 = vunpack.c.l.b16 %v286
    %v323 = vunpack.c.l.b16 %v287
    %v324 = vunpack.c.l.b16 %v288
    %v325 = vunpack.c.l.b16 %v289
    %v326 = vunpack.c.l.b16 %v290
    %v327 = vunpack.c.l.b16 %v291
    %v328 = vunpack.c.l.b16 %v292
    %v329 = vunpack.c.l.b16 %v293
    %v330 = vunpack.c.l.b16 %v294
    %v331 = vunpack.c.l.b16 %v295
    %v332 = vunpack.c.l.b16 %v296
    %v333 = vunpack.c.l.b16 %v297
    %v334 = vunpack.c.l.b16 %v298
    %v335 = vunpack.c.l.b16 %v299
    %v336 = vunpack.c.l.b16 %v300
    %v337 = vpack.c.b16 %v322, %v321
    %v338 = vpack.c.b16 %v324, %v323
    %v339 = vpack.c.b16 %v326, %v325
    %v340 = vpack.c.b16 %v328, %v327
    %v341 = vpack.c.b16 %v330, %v329
    %v342 = vpack.c.b16 %v332, %v331
    %v343 = vpack.c.b16 %v334, %v333
    %v344 = vpack.c.b16 %v336, %v335
    %353 = vmatpush.bf16.msra.mxu0 %v344
    %354 = vmatpush.bf16.msra.mxu0 %v343
    %355 = vmatpush.bf16.msra.mxu0 %v342
    %356 = vmatpush.bf16.msra.mxu0 %v341
    %357 = vmatpush.bf16.msra.mxu0 %v340
    %358 = vmatpush.bf16.msra.mxu0 %v339
    %359 = vmatpush.bf16.msra.mxu0 %v338
    %360 = vmatpush.bf16.msra.mxu0 %v337
    %361 = vmatmul.bf16.gmra.mxu0 %v284
    %v362 = vpop.f32.mrf.mxu0
    %v363 = vadd.f32 %v303, %v362
    %v364 = vpop.f32.mrf.mxu0
    %365 = vdwg.mxu0
    %366 = vst [vmem:[#allocation10] sm:$0xff] %v363
    // Predicated region
    $region46: #{tpu_custom_call.1} parent=1 // pred_check
      _
    $region47: #{tpu_custom_call.1} parent=1 // pred_check_branch
      %368 = sbr.rel (0) target = $region49
    $region48: #{tpu_custom_call.1} parent=1 // pred_region
      %370 = vsyncadd [#allocation4], 0
      %s372 = sshll.u32 [#allocation10], 4
      %s373 = int_to_ptr.vmem [resolvable:$true] %s372
      %s374 = sshll.u32 %s7, 4
      %s375 = int_to_ptr.hbm [resolvable:$true] %s374
      %377 = dma.vmem_to_hbm [thread:$0]  %s373, 128, %s375, [#allocation4]
    $region49: #{tpu_custom_call.1} parent=1 // pred_fallthru
      _
    // Predicated region
    $region50: #{tpu_custom_call.1} parent=1 // pred_check
      _
    $region51: #{tpu_custom_call.1} parent=1 // pred_check_branch
      %379 = sbr.rel (0) target = $region53
    $region52: #{tpu_custom_call.1} parent=1 // pred_region
      %381 = dma.done [#allocation4], 128
    $region53: #{tpu_custom_call.1} parent=1 // pred_fallthru
      _
    %382 = vsyncpa [#allocation3], 1
    %383 = vsyncpa [#allocation6], 1
    %384 = vsyncpa [#allocation9], 1
    %385 = vsyncpa [#allocation4], 1

</llo_original>
